<compile_context>
chip_gen: v6e
topology: v6e:2x2x1
jax: 0.10.0
libtpu: 0.0.40
codegen_flags: <defaults>
</compile_context>

<pallas_src>
import math
import functools

import jax
import jax.numpy as jnp
from jax import lax
from jax.experimental import pallas as pl
from jax.experimental.pallas import tpu as pltpu


_LANE = 128
_MIB = 1 << 20


def _round_up(x, m):
    return ((x + m - 1) // m) * m


def _vmem_budget_bytes():
    """Per-generation usable VMEM budget for this kernel's pipeline buffers."""
    cap = None
    try:  # exact hardware query when available
        cap = getattr(pltpu.get_tpu_info(), "vmem_capacity_bytes", None)
    except Exception:
        cap = None
    if cap is None:
        try:
            kind = jax.devices()[0].device_kind.lower()
        except Exception:
            kind = ""
        if "v7" in kind:
            cap = 64 * _MIB                       # 64 MiB per TensorCore on v7x
        elif any(k in kind for k in ("v4", "v5", "v6")):
            cap = 128 * _MIB
        elif any(k in kind for k in ("v2", "v3")):
            cap = 16 * _MIB
        else:
            cap = 64 * _MIB                       # unknown: be conservative
    # Leave headroom for Mosaic internal scratch / semaphores / misc.
    return max(8 * _MIB, int(cap * 0.75))


def _is_v7x():
    try:
        return "v7" in jax.devices()[0].device_kind.lower()
    except Exception:
        return False


def _derive_tile(B, D, O, x_itemsize, budget, x_buffers,
                 target_x_tile_bytes=8 * _MIB):
    """Batch-tile rows (multiple of 128), sized in BYTES with lane padding.

    Per-row VMEM cost:
      x   : x_buffers * roundup(D,128) * itemsize   (lane padding!)
      out : 2 * roundup(O,128) * 4                  (O=2 still pads to 128 lanes)
    plus the resident weight / bias buffers.
    """
    d_pad = _round_up(max(D, 1), _LANE)
    o_pad = _round_up(max(O, 1), _LANE)
    w_bytes = 2 * _round_up(max(O, 1), 8) * d_pad * 4
    b_bytes = 2 * 8 * o_pad * 4
    per_row = x_buffers * d_pad * x_itemsize + 2 * o_pad * 4
    usable = budget - w_bytes - b_bytes - 2 * _MIB        # misc headroom
    tm_budget = usable // per_row
    tm_target = target_x_tile_bytes // (d_pad * x_itemsize)
    tm = int(min(tm_budget, tm_target))
    tm = max(_LANE, (tm // _LANE) * _LANE)
    # TODO(synk): for extremely wide D (a single 128-row tile no longer fits the
    # budget) a feature-dim (K) tiling with an f32 accumulator would be needed.
    return tm


def _linear_kernel(x_ref, w_ref, b_ref, o_ref):
    # (tm, O) = x @ W^T, expressed as a contraction on the feature axis of BOTH
    # operands so the MXU is fed directly (no in-kernel transpose / relayout).
    # Accumulation in f32; bias broadcast over the batch rows.
    logit = lax.dot_general(
        x_ref[...], w_ref[...],
        dimension_numbers=(((1,), (1,)), ((), ())),
        preferred_element_type=jnp.float32,
    ) + b_ref[...]
    o_ref[...] = logit.astype(o_ref.dtype)


def _build_linear_call(B, D, O, x_dtype, tm, grid_len, dim_sem, x_buffers,
                       vmem_limit):
    x_spec_kwargs = {}
    if x_buffers != 2 and hasattr(pl, "Buffered"):
        # Deeper pipeline on x: per-tile compute is essentially zero, so the
        # pipeline is pure DMA and a 3rd buffer hides the per-step bubble.
        x_spec_kwargs["pipeline_mode"] = pl.Buffered(x_buffers)

    in_specs = [
        pl.BlockSpec((tm, D), lambda i: (i, 0), **x_spec_kwargs),  # x: batch-tiled
        pl.BlockSpec((O, D), lambda i: (0, 0)),                    # W: resident
        pl.BlockSpec((1, O), lambda i: (0, 0)),                    # bias: resident
    ]
    out_specs = pl.BlockSpec((tm, O), lambda i: (i, 0))            # (B, O) directly

    cost = pl.CostEstimate(
        flops=2 * B * D * O,
        transcendentals=0,
        bytes_accessed=(B * D * jnp.dtype(x_dtype).itemsize
                        + O * D * 4 + O * 4 + B * O * 4),
    )

    return pl.pallas_call(
        _linear_kernel,
        out_shape=jax.ShapeDtypeStruct((B, O), jnp.float32),
        grid=(grid_len,),
        in_specs=in_specs,
        out_specs=out_specs,
        compiler_params=pltpu.CompilerParams(
            dimension_semantics=(dim_sem,),
            vmem_limit_bytes=int(vmem_limit),
        ),
        cost_estimate=cost,
    )


def logistic_regression_forward(x, weight, bias, *, bn: bool = False,
                                eps: float = 1e-5, block_rows=None):
    """Pallas forward pass.  x: (B, D), weight: (O, D), bias: (O,) -> (B, O) f32."""
    B, D = x.shape
    O = weight.shape[0]
    x_itemsize = jnp.dtype(x.dtype).itemsize

    # Tiny weight cast keeps the MXU operand pair homogeneous if the caller
    # feeds bf16 activations; the epilogue stays f32.
    w = weight.astype(x.dtype)
    b2 = bias.reshape(1, O).astype(jnp.float32)

    budget = _vmem_budget_bytes()
    want_buffers = 3
    if block_rows is not None:
        tm = max(_LANE, (int(block_rows) // _LANE) * _LANE)
    else:
        tm = _derive_tile(B, D, O, x_itemsize, budget, want_buffers)

    if B <= tm:
        tm, grid_len = B, 1          # single full block: full dims, no (8,128) issue
        want_buffers = 2
    else:
        grid_len = pl.cdiv(B, tm)

    # CORE_PARALLEL actually splits the batch axis across v7x's 2 TensorCores;
    # on single-TC chips the plain "parallel" annotation is the safe choice.
    if _is_v7x() and grid_len > 1:
        preferred_sem = getattr(pltpu, "CORE_PARALLEL", "parallel")
    else:
        preferred_sem = "parallel"

    configs = [
        dict(dim_sem=preferred_sem, x_buffers=want_buffers),
        dict(dim_sem="arbitrary", x_buffers=2),       # conservative fallback
    ]
    logits = None
    last_err = None
    for cfg in configs:
        try:
            call = _build_linear_call(B, D, O, x.dtype, tm, grid_len,
                                      cfg["dim_sem"], cfg["x_buffers"], budget)
            logits = call(x, w, b2)
            break
        except Exception as e:        # defensive: retry with the safe config
            last_err = e
    if logits is None:
        raise last_err

    if bn:
        # BatchNorm1d(O), training mode, fresh gamma=1 / beta=0.  The logits are
        # only (B, O) with O tiny, so this centered two-pass epilogue is
        # negligible HBM traffic versus the x read and avoids the
        # E[x^2]-E[x]^2 cancellation; var is clamped before rsqrt.
        mean = jnp.mean(logits, axis=0, keepdims=True)
        var = jnp.mean(jnp.square(logits - mean), axis=0, keepdims=True)
        logits = (logits - mean) * lax.rsqrt(jnp.maximum(var, 0.0) + eps)
        # TODO(synk): running-stat updates / eval-mode BN and trained affine
        # parameters are not modeled (matches a freshly-initialized BN layer
        # in training mode only).

    return logits


def init_params(key, input_dim, output_dim=2):
    """Deterministic init matching the PyTorch module.

    kaiming_uniform_(a=sqrt(5)) on an (O, D) weight -> U(-1/sqrt(D), 1/sqrt(D));
    bias -> U(-1/sqrt(fan_in), 1/sqrt(fan_in)) with fan_in = D.
    """
    kw, kb = jax.random.split(key)
    bound = 1.0 / math.sqrt(input_dim)
    weight = jax.random.uniform(
        kw, (output_dim, input_dim), jnp.float32, minval=-bound, maxval=bound)
    bias = jax.random.uniform(
        kb, (output_dim,), jnp.float32, minval=-bound, maxval=bound)
    return weight, bias


if __name__ == "__main__":
    key = jax.random.PRNGKey(0)
    k_x, k_p, k_big = jax.random.split(key, 3)

    batch, input_dim, output_dim = 8, 32, 2
    x = jax.random.normal(k_x, (batch, input_dim), jnp.float32)
    weight, bias = init_params(k_p, input_dim, output_dim)

    # bn=False (module default), small batch -> single full block.
    out = jax.block_until_ready(
        logistic_regression_forward(x, weight, bias, bn=False))
    ref = x @ weight.T + bias
    assert out.shape == (batch, output_dim)
    assert jnp.allclose(out, ref, atol=1e-5, rtol=1e-5), "mismatch vs reference"

    # bn=True (training-mode batch stats).
    out_bn = jax.block_until_ready(
        logistic_regression_forward(x, weight, bias, bn=True))
    mean = ref.mean(axis=0, keepdims=True)
    var = ((ref - mean) ** 2).mean(axis=0, keepdims=True)
    ref_bn = (ref - mean) / jnp.sqrt(var + 1e-5)
    assert jnp.allclose(out_bn, ref_bn, atol=1e-4, rtol=1e-4), "bn mismatch"

    # Exercise the tiled (gridded) path, including a partial last tile.
    big_batch = 1000
    x_big = jax.random.normal(k_big, (big_batch, input_dim), jnp.float32)
    out_big = jax.block_until_ready(
        logistic_regression_forward(x_big, weight, bias, bn=False, block_rows=256))
    ref_big = x_big @ weight.T + bias
    assert out_big.shape == (big_batch, output_dim)
    assert jnp.allclose(out_big, ref_big, atol=1e-4, rtol=1e-4), "tiled mismatch"

    # bn=True over the tiled path (stats computed over the exact (B, O) logits,
    # so partial-tile padding cannot contaminate them).
    out_big_bn = jax.block_until_ready(
        logistic_regression_forward(x_big, weight, bias, bn=True, block_rows=256))
    mean_b = ref_big.mean(axis=0, keepdims=True)
    var_b = ((ref_big - mean_b) ** 2).mean(axis=0, keepdims=True)
    ref_big_bn = (ref_big - mean_b) / jnp.sqrt(var_b + 1e-5)
    assert jnp.allclose(out_big_bn, ref_big_bn, atol=1e-4, rtol=1e-4), "tiled bn mismatch"

    print("KERNEL_OK")
</pallas_src>

<mosaic_0001>
module attributes {stable_mosaic.version = 11 : i64} {
  func.func @_linear_kernel(%arg0: i32, %arg1: memref<8x32xf32, #tpu.memory_space<vmem>>, %arg2: memref<2x32xf32, #tpu.memory_space<vmem>>, %arg3: memref<1x2xf32, #tpu.memory_space<vmem>>, %arg4: memref<8x2xf32, #tpu.memory_space<vmem>>) attributes {dimension_semantics = [#tpu.dimension_semantics<parallel>], iteration_bounds = array<i64: 1>, scalar_prefetch = 0 : i64, scratch_operands = 0 : i64, tpu.core_type = #tpu.core_type<tc>, window_params = [{transform_indices = @transform_0, window_bounds = array<i64: 8, 32>}, {pipeline_mode = #tpu.pipeline_mode<synchronous>, transform_indices = @transform_1, window_bounds = array<i64: 2, 32>}, {pipeline_mode = #tpu.pipeline_mode<synchronous>, transform_indices = @transform_2, window_bounds = array<i64: 1, 2>}, {transform_indices = @transform_3, window_bounds = array<i64: 8, 2>}]} {
    %c0 = arith.constant 0 : index
    %c0_0 = arith.constant 0 : index
    %0 = vector.load %arg1[%c0, %c0_0] : memref<8x32xf32, #tpu.memory_space<vmem>>, vector<8x32xf32>
    %c0_1 = arith.constant 0 : index
    %c0_2 = arith.constant 0 : index
    %1 = vector.load %arg2[%c0_1, %c0_2] : memref<2x32xf32, #tpu.memory_space<vmem>>, vector<2x32xf32>
    %cst = arith.constant dense<0.000000e+00> : vector<8x2xf32>
    %2 = tpu.matmul %0, %1, %cst {dimension_numbers = #tpu.dot_dimension_numbers<[1], [1], [0], [0], [0, 0, 1, 0], [], []>} : vector<8x32xf32>, vector<2x32xf32>, vector<8x2xf32> -> vector<8x2xf32>
    %c0_3 = arith.constant 0 : index
    %c0_4 = arith.constant 0 : index
    %3 = vector.load %arg3[%c0_3, %c0_4] : memref<1x2xf32, #tpu.memory_space<vmem>>, vector<1x2xf32>
    %4 = vector.broadcast %3 : vector<1x2xf32> to vector<8x2xf32>
    %5 = arith.addf %2, %4 : vector<8x2xf32>
    %c0_5 = arith.constant 0 : index
    %c0_6 = arith.constant 0 : index
    %6 = vector.load %arg4[%c0_5, %c0_6] : memref<8x2xf32, #tpu.memory_space<vmem>>, vector<8x2xf32>
    tpu.vector_store %arg4[%c0_5, %c0_6], %5 {strides = array<i32>} : memref<8x2xf32, #tpu.memory_space<vmem>>, vector<8x2xf32>,
    return
  }
  func.func @transform_0(%arg0: i32) -> (i32, i32) {
    %c0_i32 = arith.constant 0 : i32
    %c0_i32_0 = arith.constant 0 : i32
    return %arg0, %c0_i32 : i32, i32
  }
  func.func @transform_1(%arg0: i32) -> (i32, i32) {
    %c0_i32 = arith.constant 0 : i32
    %c0_i32_0 = arith.constant 0 : i32
    %c0_i32_1 = arith.constant 0 : i32
    return %c0_i32, %c0_i32_0 : i32, i32
  }
  func.func @transform_2(%arg0: i32) -> (i32, i32) {
    %c0_i32 = arith.constant 0 : i32
    %c0_i32_0 = arith.constant 0 : i32
    %c0_i32_1 = arith.constant 0 : i32
    return %c0_i32, %c0_i32_0 : i32, i32
  }
  func.func @transform_3(%arg0: i32) -> (i32, i32) {
    %c0_i32 = arith.constant 0 : i32
    %c0_i32_0 = arith.constant 0 : i32
    return %arg0, %c0_i32 : i32, i32
  }
}

module attributes {stable_mosaic.version = 11 : i64} {
  func.func @_linear_kernel(%arg0: i32, %arg1: memref<8x32xf32, #tpu.memory_space<vmem>>, %arg2: memref<2x32xf32, #tpu.memory_space<vmem>>, %arg3: memref<1x2xf32, #tpu.memory_space<vmem>>, %arg4: memref<8x2xf32, #tpu.memory_space<vmem>>) attributes {dimension_semantics = [#tpu.dimension_semantics<arbitrary>], iteration_bounds = array<i64: 1>, scalar_prefetch = 0 : i64, scratch_operands = 0 : i64, tpu.core_type = #tpu.core_type<tc>, window_params = [{transform_indices = @transform_0, window_bounds = array<i64: 8, 32>}, {pipeline_mode = #tpu.pipeline_mode<synchronous>, transform_indices = @transform_1, window_bounds = array<i64: 2, 32>}, {pipeline_mode = #tpu.pipeline_mode<synchronous>, transform_indices = @transform_2, window_bounds = array<i64: 1, 2>}, {transform_indices = @transform_3, window_bounds = array<i64: 8, 2>}]} {
    %c0 = arith.constant 0 : index
    %c0_0 = arith.constant 0 : index
    %0 = vector.load %arg1[%c0, %c0_0] : memref<8x32xf32, #tpu.memory_space<vmem>>, vector<8x32xf32>
    %c0_1 = arith.constant 0 : index
    %c0_2 = arith.constant 0 : index
    %1 = vector.load %arg2[%c0_1, %c0_2] : memref<2x32xf32, #tpu.memory_space<vmem>>, vector<2x32xf32>
    %cst = arith.constant dense<0.000000e+00> : vector<8x2xf32>
    %2 = tpu.matmul %0, %1, %cst {dimension_numbers = #tpu.dot_dimension_numbers<[1], [1], [0], [0], [0, 0, 1, 0], [], []>} : vector<8x32xf32>, vector<2x32xf32>, vector<8x2xf32> -> vector<8x2xf32>
    %c0_3 = arith.constant 0 : index
    %c0_4 = arith.constant 0 : index
    %3 = vector.load %arg3[%c0_3, %c0_4] : memref<1x2xf32, #tpu.memory_space<vmem>>, vector<1x2xf32>
    %4 = vector.broadcast %3 : vector<1x2xf32> to vector<8x2xf32>
    %5 = arith.addf %2, %4 : vector<8x2xf32>
    %c0_5 = arith.constant 0 : index
    %c0_6 = arith.constant 0 : index
    %6 = vector.load %arg4[%c0_5, %c0_6] : memref<8x2xf32, #tpu.memory_space<vmem>>, vector<8x2xf32>
    tpu.vector_store %arg4[%c0_5, %c0_6], %5 {strides = array<i32>} : memref<8x2xf32, #tpu.memory_space<vmem>>, vector<8x2xf32>,
    return
  }
  func.func @transform_0(%arg0: i32) -> (i32, i32) {
    %c0_i32 = arith.constant 0 : i32
    %c0_i32_0 = arith.constant 0 : i32
    return %arg0, %c0_i32 : i32, i32
  }
  func.func @transform_1(%arg0: i32) -> (i32, i32) {
    %c0_i32 = arith.constant 0 : i32
    %c0_i32_0 = arith.constant 0 : i32
    %c0_i32_1 = arith.constant 0 : i32
    return %c0_i32, %c0_i32_0 : i32, i32
  }
  func.func @transform_2(%arg0: i32) -> (i32, i32) {
    %c0_i32 = arith.constant 0 : i32
    %c0_i32_0 = arith.constant 0 : i32
    %c0_i32_1 = arith.constant 0 : i32
    return %c0_i32, %c0_i32_0 : i32, i32
  }
  func.func @transform_3(%arg0: i32) -> (i32, i32) {
    %c0_i32 = arith.constant 0 : i32
    %c0_i32_0 = arith.constant 0 : i32
    return %arg0, %c0_i32 : i32, i32
  }
}

</mosaic_0001>

<llo_original>
// kernel: tpu_custom_call.1
$region0: #{tpu_custom_call.1}
  #allocation0 [shape = 'u32[]', space=smem, size = 0x4, offset = 0x4, fixed_abs, tag = 'smem constant byte address 0x4 - core index']
  #allocation1 [shape = 'u32[144,128]{1,0:T(1,128)}', space=vmem, size = 0x12000, scoped, tag = 'internal scratch']
  %s0 = inlined_call_operand.hbm [shape: f32[8,32], index: 0, kind: input, shape index: {}]
  %s1 = inlined_call_operand.hbm [shape: f32[2,32], index: 1, kind: input, shape index: {}]
  %s2 = inlined_call_operand.vmem [shape: f32[1,2], index: 2, kind: input, shape index: {}]
  %s3 = inlined_call_operand.vmem [shape: f32[8,2], index: 3, kind: output, shape index: {}]
  %s4 = sld [smem:[#allocation0]]
  $region30: #{tpu_custom_call.1} parent=0
    _
  %s6 = ssub.s32 1, %s4
  %s7 = scalar_select 0, %s6, %s4
  $region1: #{tpu_custom_call.1} parent=0
    #allocation2 [shape = 'u8[4096]{0}', space=vmem, size = 0x1000, scoped, tag = 'input window, operand 0, single buffered']
    #allocation3 [shape = 's32[1]{0}', space=sflag, size = 0x4, scoped, tag = 'scoped memory for tpu_custom_call.1']
    #allocation4 [shape = 'u8[1024]{0}', space=vmem, size = 0x400, scoped, tag = 'input window, operand 1, single buffered']
    #allocation5 [shape = 's32[1]{0}', space=sflag, size = 0x4, scoped, tag = 'scoped memory for tpu_custom_call.1']
    %8 = vsyncpa [#allocation3], 0
    %9 = vsyncpa [#allocation5], 0
    // Predicated region
    $region2: #{tpu_custom_call.1} parent=1 // pred_check
      _
    $region3: #{tpu_custom_call.1} parent=1 // pred_check_branch
      %11 = sbr.rel (0) target = $region5
    $region4: #{tpu_custom_call.1} parent=1 // pred_region
      %s13 = ssub.s32 128, 128
      %14 = vsyncadd [#allocation3], %s13
      %s16 = sshll.u32 [#allocation2], 4
      %s17 = int_to_ptr.vmem [resolvable:$true] %s16
      %19 = dma.hbm_to_vmem [thread:$0]  %s0, 128, %s17, [#allocation3]
    $region5: #{tpu_custom_call.1} parent=1 // pred_fallthru
      _
    // Predicated region
    $region6: #{tpu_custom_call.1} parent=1 // pred_check
      _
    $region7: #{tpu_custom_call.1} parent=1 // pred_check_branch
      %21 = sbr.rel (0) target = $region9
    $region8: #{tpu_custom_call.1} parent=1 // pred_region
      %s23 = ssub.s32 32, 32
      %24 = vsyncadd [#allocation5], %s23
      %s26 = sshll.u32 [#allocation4], 4
      %s27 = int_to_ptr.vmem [resolvable:$true] %s26
      %29 = dma.hbm_to_vmem [thread:$0]  %s1, 32, %s27, [#allocation5]
    $region9: #{tpu_custom_call.1} parent=1 // pred_fallthru
      _
    // Predicated region
    $region10: #{tpu_custom_call.1} parent=1 // pred_check
      _
    $region11: #{tpu_custom_call.1} parent=1 // pred_check_branch
      %31 = sbr.rel (0) target = $region13
    $region12: #{tpu_custom_call.1} parent=1 // pred_region
      _
    $region13: #{tpu_custom_call.1} parent=1 // pred_fallthru
      _
    // Predicated region
    $region14: #{tpu_custom_call.1} parent=1 // pred_check
      _
    $region15: #{tpu_custom_call.1} parent=1 // pred_check_branch
      %33 = sbr.rel (0) target = $region17
    $region16: #{tpu_custom_call.1} parent=1 // pred_region
      %34 = dma.done [#allocation3], 128
    $region17: #{tpu_custom_call.1} parent=1 // pred_fallthru
      _
    // Predicated region
    $region18: #{tpu_custom_call.1} parent=1 // pred_check
      _
    $region19: #{tpu_custom_call.1} parent=1 // pred_check_branch
      %36 = sbr.rel (0) target = $region21
    $region20: #{tpu_custom_call.1} parent=1 // pred_region
      %37 = dma.done [#allocation5], 32
    $region21: #{tpu_custom_call.1} parent=1 // pred_fallthru
      _
    %v38 = vld [vmem:[#allocation2] sm:$0xff]
    %v39 = vld [vmem:[#allocation4] sm:$0x3]
    %v40 = vld [vmem:[%s2] sm:$0x1]
    %v42 = vlaneseq
    %v43 = vshrl.u32 %v42, 7
    %v44 = vsub.s32 0, %v43
    %v45 = vrot.slane %v40, %v44
    %vm47 = vcmask 261120
    %v49 = vsel %vm47, %v38, 0
    %v52 = vsel %vm47, %v39, 0
    %54 = vmatprep.subr.mxu0 0.0
    %55 = vmatpush1.xpose.msra.mxu0 0.0
    %56 = vmatprep.subr.mxu0 0.0
    %57 = vmatpush1.xpose.msra.mxu0 0.0
    %58 = vmatprep.subr.mxu0 0.0
    %59 = vmatpush1.xpose.msra.mxu0 0.0
    %60 = vmatprep.subr.mxu0 0.0
    %61 = vmatpush1.xpose.msra.mxu0 0.0
    %62 = vmatprep.subr.mxu0 0.0
    %63 = vmatpush1.xpose.msra.mxu0 0.0
    %64 = vmatprep.subr.mxu0 0.0
    %65 = vmatpush1.xpose.msra.mxu0 0.0
    %66 = vmatprep.subr.mxu0 0.0
    %67 = vmatpush1.xpose.msra.mxu0 0.0
    %68 = vmatprep.subr.mxu0 0.0
    %69 = vmatpush1.xpose.msra.mxu0 0.0
    %70 = vmatprep.subr.mxu0 0.0
    %71 = vmatpush1.xpose.msra.mxu0 0.0
    %72 = vmatprep.subr.mxu0 0.0
    %73 = vmatpush1.xpose.msra.mxu0 0.0
    %74 = vmatprep.subr.mxu0 0.0
    %75 = vmatpush1.xpose.msra.mxu0 0.0
    %76 = vmatprep.subr.mxu0 0.0
    %77 = vmatpush1.xpose.msra.mxu0 0.0
    %78 = vmatprep.subr.mxu0 0.0
    %79 = vmatpush1.xpose.msra.mxu0 0.0
    %80 = vmatprep.subr.mxu0 0.0
    %81 = vmatpush1.xpose.msra.mxu0 0.0
    %82 = vmatprep.subr.mxu0 0.0
    %83 = vmatpush1.xpose.msra.mxu0 0.0
    %84 = vmatprep.subr.mxu0 0.0
    %85 = vmatpush1.xpose.msra.mxu0 %v52
    %86 = vmatprep.subr.mxu0 0.0
    %87 = vmatpush2.xpose.msra.mxu0 0.0
    %88 = vmatprep.subr.mxu0 0.0
    %89 = vmatpush2.xpose.msra.mxu0 0.0
    %90 = vmatprep.subr.mxu0 0.0
    %91 = vmatpush2.xpose.msra.mxu0 0.0
    %92 = vmatprep.subr.mxu0 0.0
    %93 = vmatpush2.xpose.msra.mxu0 0.0
    %94 = vmatprep.subr.mxu0 0.0
    %95 = vmatpush2.xpose.msra.mxu0 0.0
    %96 = vmatprep.subr.mxu0 0.0
    %97 = vmatpush2.xpose.msra.mxu0 0.0
    %98 = vmatprep.subr.mxu0 0.0
    %99 = vmatpush2.xpose.msra.mxu0 0.0
    %100 = vmatprep.subr.mxu0 0.0
    %101 = vmatpush2.xpose.msra.mxu0 0.0
    %102 = vmatprep.subr.mxu0 0.0
    %103 = vmatpush2.xpose.msra.mxu0 0.0
    %104 = vmatprep.subr.mxu0 0.0
    %105 = vmatpush2.xpose.msra.mxu0 0.0
    %106 = vmatprep.subr.mxu0 0.0
    %107 = vmatpush2.xpose.msra.mxu0 0.0
    %108 = vmatprep.subr.mxu0 0.0
    %109 = vmatpush2.xpose.msra.mxu0 0.0
    %110 = vmatprep.subr.mxu0 0.0
    %111 = vmatpush2.xpose.msra.mxu0 0.0
    %112 = vmatprep.subr.mxu0 0.0
    %113 = vmatpush2.xpose.msra.mxu0 0.0
    %114 = vmatprep.subr.mxu0 0.0
    %115 = vmatpush2.xpose.msra.mxu0 0.0
    %116 = vmatprep.subr.mxu0 0.0
    %117 = vmatpush2.xpose.msra.mxu0 0.0
    %118 = vmatprep.mubr.f32.mxu0 0.0
    %119 = vmatmul.mubr.f32.gmra.mxu0 %v49
    %v120 = vpop.f32.mrf.mxu0
    %v121 = vadd.f32 %v45, %v120
    %v122 = vpop.f32.mrf.mxu0
    %123 = vdwg.mxu0
    %vm124 = vcmask 15360
    %125 = vst.msk [vmem:[%s3] sm:$0xff] %vm124, %v121
    // Predicated region
    $region22: #{tpu_custom_call.1} parent=1 // pred_check
      _
    $region23: #{tpu_custom_call.1} parent=1 // pred_check_branch
      %127 = sbr.rel (0) target = $region25
    $region24: #{tpu_custom_call.1} parent=1 // pred_region
      _
    $region25: #{tpu_custom_call.1} parent=1 // pred_fallthru
      _
    // Predicated region
    $region26: #{tpu_custom_call.1} parent=1 // pred_check
      _
    $region27: #{tpu_custom_call.1} parent=1 // pred_check_branch
      %129 = sbr.rel (0) target = $region29
    $region28: #{tpu_custom_call.1} parent=1 // pred_region
      _
    $region29: #{tpu_custom_call.1} parent=1 // pred_fallthru
      _
    %130 = vsyncpa [#allocation3], 1
    %131 = vsyncpa [#allocation5], 1

// kernel: tpu_custom_call.1
$region0: #{tpu_custom_call.1}
  #allocation0 [shape = 'u32[]', space=smem, size = 0x4, offset = 0x4, fixed_abs, tag = 'smem constant byte address 0x4 - core index']
  #allocation1 [shape = 'u32[144,128]{1,0:T(1,128)}', space=vmem, size = 0x12000, scoped, tag = 'internal scratch']
  %s0 = inlined_call_operand.hbm [shape: f32[8,32], index: 0, kind: input, shape index: {}]
  %s1 = inlined_call_operand.hbm [shape: f32[2,32], index: 1, kind: input, shape index: {}]
  %s2 = inlined_call_operand.vmem [shape: f32[1,2], index: 2, kind: input, shape index: {}]
  %s3 = inlined_call_operand.vmem [shape: f32[8,2], index: 3, kind: output, shape index: {}]
  %s4 = sld [smem:[#allocation0]]
  $region30: #{tpu_custom_call.1} parent=0
    _
  %s6 = ssub.s32 1, %s4
  %s7 = scalar_select 0, %s6, %s4
  $region1: #{tpu_custom_call.1} parent=0
    #allocation2 [shape = 'u8[4096]{0}', space=vmem, size = 0x1000, scoped, tag = 'input window, operand 0, single buffered']
    #allocation3 [shape = 's32[1]{0}', space=sflag, size = 0x4, scoped, tag = 'scoped memory for tpu_custom_call.1']
    #allocation4 [shape = 'u8[1024]{0}', space=vmem, size = 0x400, scoped, tag = 'input window, operand 1, single buffered']
    #allocation5 [shape = 's32[1]{0}', space=sflag, size = 0x4, scoped, tag = 'scoped memory for tpu_custom_call.1']
    %8 = vsyncpa [#allocation3], 0
    %9 = vsyncpa [#allocation5], 0
    // Predicated region
    $region2: #{tpu_custom_call.1} parent=1 // pred_check
      _
    $region3: #{tpu_custom_call.1} parent=1 // pred_check_branch
      %11 = sbr.rel (0) target = $region5
    $region4: #{tpu_custom_call.1} parent=1 // pred_region
      %s13 = ssub.s32 128, 128
      %14 = vsyncadd [#allocation3], %s13
      %s16 = sshll.u32 [#allocation2], 4
      %s17 = int_to_ptr.vmem [resolvable:$true] %s16
      %19 = dma.hbm_to_vmem [thread:$0]  %s0, 128, %s17, [#allocation3]
    $region5: #{tpu_custom_call.1} parent=1 // pred_fallthru
      _
    // Predicated region
    $region6: #{tpu_custom_call.1} parent=1 // pred_check
      _
    $region7: #{tpu_custom_call.1} parent=1 // pred_check_branch
      %21 = sbr.rel (0) target = $region9
    $region8: #{tpu_custom_call.1} parent=1 // pred_region
      %s23 = ssub.s32 32, 32
      %24 = vsyncadd [#allocation5], %s23
      %s26 = sshll.u32 [#allocation4], 4
      %s27 = int_to_ptr.vmem [resolvable:$true] %s26
      %29 = dma.hbm_to_vmem [thread:$0]  %s1, 32, %s27, [#allocation5]
    $region9: #{tpu_custom_call.1} parent=1 // pred_fallthru
      _
    // Predicated region
    $region10: #{tpu_custom_call.1} parent=1 // pred_check
      _
    $region11: #{tpu_custom_call.1} parent=1 // pred_check_branch
      %31 = sbr.rel (0) target = $region13
    $region12: #{tpu_custom_call.1} parent=1 // pred_region
      _
    $region13: #{tpu_custom_call.1} parent=1 // pred_fallthru
      _
    // Predicated region
    $region14: #{tpu_custom_call.1} parent=1 // pred_check
      _
    $region15: #{tpu_custom_call.1} parent=1 // pred_check_branch
      %33 = sbr.rel (0) target = $region17
    $region16: #{tpu_custom_call.1} parent=1 // pred_region
      %34 = dma.done [#allocation3], 128
    $region17: #{tpu_custom_call.1} parent=1 // pred_fallthru
      _
    // Predicated region
    $region18: #{tpu_custom_call.1} parent=1 // pred_check
      _
    $region19: #{tpu_custom_call.1} parent=1 // pred_check_branch
      %36 = sbr.rel (0) target = $region21
    $region20: #{tpu_custom_call.1} parent=1 // pred_region
      %37 = dma.done [#allocation5], 32
    $region21: #{tpu_custom_call.1} parent=1 // pred_fallthru
      _
    %v38 = vld [vmem:[#allocation2] sm:$0xff]
    %v39 = vld [vmem:[#allocation4] sm:$0x3]
    %v40 = vld [vmem:[%s2] sm:$0x1]
    %v42 = vlaneseq
    %v43 = vshrl.u32 %v42, 7
    %v44 = vsub.s32 0, %v43
    %v45 = vrot.slane %v40, %v44
    %vm47 = vcmask 261120
    %v49 = vsel %vm47, %v38, 0
    %v52 = vsel %vm47, %v39, 0
    %54 = vmatprep.subr.mxu0 0.0
    %55 = vmatpush1.xpose.msra.mxu0 0.0
    %56 = vmatprep.subr.mxu0 0.0
    %57 = vmatpush1.xpose.msra.mxu0 0.0
    %58 = vmatprep.subr.mxu0 0.0
    %59 = vmatpush1.xpose.msra.mxu0 0.0
    %60 = vmatprep.subr.mxu0 0.0
    %61 = vmatpush1.xpose.msra.mxu0 0.0
    %62 = vmatprep.subr.mxu0 0.0
    %63 = vmatpush1.xpose.msra.mxu0 0.0
    %64 = vmatprep.subr.mxu0 0.0
    %65 = vmatpush1.xpose.msra.mxu0 0.0
    %66 = vmatprep.subr.mxu0 0.0
    %67 = vmatpush1.xpose.msra.mxu0 0.0
    %68 = vmatprep.subr.mxu0 0.0
    %69 = vmatpush1.xpose.msra.mxu0 0.0
    %70 = vmatprep.subr.mxu0 0.0
    %71 = vmatpush1.xpose.msra.mxu0 0.0
    %72 = vmatprep.subr.mxu0 0.0
    %73 = vmatpush1.xpose.msra.mxu0 0.0
    %74 = vmatprep.subr.mxu0 0.0
    %75 = vmatpush1.xpose.msra.mxu0 0.0
    %76 = vmatprep.subr.mxu0 0.0
    %77 = vmatpush1.xpose.msra.mxu0 0.0
    %78 = vmatprep.subr.mxu0 0.0
    %79 = vmatpush1.xpose.msra.mxu0 0.0
    %80 = vmatprep.subr.mxu0 0.0
    %81 = vmatpush1.xpose.msra.mxu0 0.0
    %82 = vmatprep.subr.mxu0 0.0
    %83 = vmatpush1.xpose.msra.mxu0 0.0
    %84 = vmatprep.subr.mxu0 0.0
    %85 = vmatpush1.xpose.msra.mxu0 %v52
    %86 = vmatprep.subr.mxu0 0.0
    %87 = vmatpush2.xpose.msra.mxu0 0.0
    %88 = vmatprep.subr.mxu0 0.0
    %89 = vmatpush2.xpose.msra.mxu0 0.0
    %90 = vmatprep.subr.mxu0 0.0
    %91 = vmatpush2.xpose.msra.mxu0 0.0
    %92 = vmatprep.subr.mxu0 0.0
    %93 = vmatpush2.xpose.msra.mxu0 0.0
    %94 = vmatprep.subr.mxu0 0.0
    %95 = vmatpush2.xpose.msra.mxu0 0.0
    %96 = vmatprep.subr.mxu0 0.0
    %97 = vmatpush2.xpose.msra.mxu0 0.0
    %98 = vmatprep.subr.mxu0 0.0
    %99 = vmatpush2.xpose.msra.mxu0 0.0
    %100 = vmatprep.subr.mxu0 0.0
    %101 = vmatpush2.xpose.msra.mxu0 0.0
    %102 = vmatprep.subr.mxu0 0.0
    %103 = vmatpush2.xpose.msra.mxu0 0.0
    %104 = vmatprep.subr.mxu0 0.0
    %105 = vmatpush2.xpose.msra.mxu0 0.0
    %106 = vmatprep.subr.mxu0 0.0
    %107 = vmatpush2.xpose.msra.mxu0 0.0
    %108 = vmatprep.subr.mxu0 0.0
    %109 = vmatpush2.xpose.msra.mxu0 0.0
    %110 = vmatprep.subr.mxu0 0.0
    %111 = vmatpush2.xpose.msra.mxu0 0.0
    %112 = vmatprep.subr.mxu0 0.0
    %113 = vmatpush2.xpose.msra.mxu0 0.0
    %114 = vmatprep.subr.mxu0 0.0
    %115 = vmatpush2.xpose.msra.mxu0 0.0
    %116 = vmatprep.subr.mxu0 0.0
    %117 = vmatpush2.xpose.msra.mxu0 0.0
    %118 = vmatprep.mubr.f32.mxu0 0.0
    %119 = vmatmul.mubr.f32.gmra.mxu0 %v49
    %v120 = vpop.f32.mrf.mxu0
    %v121 = vadd.f32 %v45, %v120
    %v122 = vpop.f32.mrf.mxu0
    %123 = vdwg.mxu0
    %vm124 = vcmask 15360
    %125 = vst.msk [vmem:[%s3] sm:$0xff] %vm124, %v121
    // Predicated region
    $region22: #{tpu_custom_call.1} parent=1 // pred_check
      _
    $region23: #{tpu_custom_call.1} parent=1 // pred_check_branch
      %127 = sbr.rel (0) target = $region25
    $region24: #{tpu_custom_call.1} parent=1 // pred_region
      _
    $region25: #{tpu_custom_call.1} parent=1 // pred_fallthru
      _
    // Predicated region
    $region26: #{tpu_custom_call.1} parent=1 // pred_check
      _
    $region27: #{tpu_custom_call.1} parent=1 // pred_check_branch
      %129 = sbr.rel (0) target = $region29
    $region28: #{tpu_custom_call.1} parent=1 // pred_region
      _
    $region29: #{tpu_custom_call.1} parent=1 // pred_fallthru
      _
    %130 = vsyncpa [#allocation3], 1
    %131 = vsyncpa [#allocation5], 1

</llo_original>
